<compile_context>
chip_gen: v7x
topology: tpu7x:2x2x1
jax: 0.10.0
libtpu: 0.0.40
codegen_flags: <defaults>
</compile_context>

<pallas_src>
import functools
import math

import jax
import jax.numpy as jnp
from jax import lax
from jax.experimental import pallas as pl
from jax.experimental.pallas import tpu as pltpu


# splitmix32-style constants (written as signed 32-bit literals).
_C_GOLD = -1640531535   # 0x9E3779B1
_C_MIX1 = 2146121005    # 0x7FEB352D
_C_MIX2 = -2073418101   # 0x846CA68B
_C_SPLIT = 842468008    # 0x3243F6A8 (stream-split constant)


def _mix32(v):
    """splitmix32-like avalanche mixer on int32 (logical shifts, wrapping mults)."""
    v = v ^ lax.shift_right_logical(v, jnp.int32(16))
    v = v * jnp.int32(_C_MIX1)
    v = v ^ lax.shift_right_logical(v, jnp.int32(15))
    v = v * jnp.int32(_C_MIX2)
    v = v ^ lax.shift_right_logical(v, jnp.int32(16))
    return v


def _bits_to_unit_open(bits):
    """24-bit uniform in (0, 1] (safe for log)."""
    b = lax.shift_right_logical(bits, jnp.int32(8))
    return (b.astype(jnp.float32) + 1.0) * jnp.float32(1.0 / (1 << 24))


def _bits_to_unit_halfopen(bits):
    """24-bit uniform in [0, 1)."""
    b = lax.shift_right_logical(bits, jnp.int32(8))
    return b.astype(jnp.float32) * jnp.float32(1.0 / (1 << 24))


def _plain_kernel(scale_ref, seed_ref, x_ref, o_ref, *, two_over_c, tile_rows, half_cols):
    # scale_ref: (1,) f32 SMEM -> 0.5 * 10 ** (-SNR / 10)
    # seed_ref : (1,) i32 SMEM -> PRNG seed
    # x_ref / o_ref: (TR, C) f32 VMEM row tiles (C = full lane extent of the array)
    x = x_ref[...]

    # pwr = mean(x^2 over (M*H, 2)) * 2 ; noise sigma = sqrt(pwr * 0.5 * 10^(-SNR/10)),
    # computed once per row and broadcast over lanes.
    pwr = jnp.sum(x * x, axis=-1, keepdims=True) * jnp.float32(two_over_c)  # (TR, 1)
    sigma = jnp.sqrt(pwr * scale_ref[0])                                    # (TR, 1)

    # Counter-based standard normals: one (u1, u2) pair per half-lane -> two normals
    # via Box-Muller (both cos and sin branches used), filling the full tile.  The
    # counter is the GLOBAL element index, so the realized noise is independent of the
    # row-tile size and of Pallas edge padding (padded rows are discarded on store).
    row0 = pl.program_id(0) * tile_rows
    r_idx = lax.broadcasted_iota(jnp.int32, (tile_rows, half_cols), 0) + row0
    c_idx = lax.broadcasted_iota(jnp.int32, (tile_rows, half_cols), 1)
    ctr = r_idx * jnp.int32(half_cols) + c_idx

    seed = seed_ref[0]
    s1 = _mix32(seed * jnp.int32(_C_GOLD) + jnp.int32(1))
    s2 = _mix32(seed * jnp.int32(_C_GOLD) + jnp.int32(_C_SPLIT))
    u1 = _bits_to_unit_open(_mix32(ctr ^ s1))
    u2 = _bits_to_unit_halfopen(_mix32(ctr ^ s2))

    rad = jnp.sqrt(-2.0 * jnp.log(u1))
    ang = jnp.float32(2.0 * math.pi) * u2
    z1 = rad * jnp.cos(ang)
    z2 = rad * jnp.sin(ang)
    noise = jnp.concatenate([z1, z2], axis=-1)  # (TR, C)

    o_ref[...] = x + sigma * noise


def _choose_row_tile(rows, cols):
    """Row-tile: multiple of 8, ~8 MiB per block buffer, >= ~4 grid steps for big R."""
    if rows <= 8:
        return rows
    bytes_per_row = 4 * cols
    by_vmem = max(8, ((8 << 20) // max(bytes_per_row, 1)) // 8 * 8)
    by_steps = max(8, (rows // 4) // 8 * 8)  # keep the DMA pipeline (and v7x TCs) busy
    return max(8, min(rows, by_vmem, by_steps))


@jax.jit
def plain_forward(x, snr, seed):
    """x: (N, P, M, H, 2) float32; snr: scalar (dB); seed: int scalar.
    Returns rx: (N, P, M*H, 2) float32, matching PLAIN.forward."""
    N, P, M, H, _ = x.shape
    S = M * H
    R, C = N * P, 2 * S

    x_flat = x.reshape(R, C)   # lane-dense: one signal per row

    TR = _choose_row_tile(R, C)
    grid = (pl.cdiv(R, TR),)

    scale_half = (0.5 * (10.0 ** (-jnp.asarray(snr, jnp.float32) / 10.0))).reshape(1)
    seed_arr = jnp.asarray(seed, jnp.int32).reshape(1)

    kernel = functools.partial(
        _plain_kernel, two_over_c=2.0 / C, tile_rows=TR, half_cols=C // 2)

    out_flat = pl.pallas_call(
        kernel,
        out_shape=jax.ShapeDtypeStruct((R, C), jnp.float32),
        grid_spec=pltpu.PrefetchScalarGridSpec(
            num_scalar_prefetch=0,
            grid=grid,
            in_specs=[
                pl.BlockSpec(memory_space=pltpu.MemorySpace.SMEM),   # 0.5 * 10^(-SNR/10)
                pl.BlockSpec(memory_space=pltpu.MemorySpace.SMEM),   # PRNG seed
                pl.BlockSpec((TR, C), lambda i: (i, 0)),             # x tile
            ],
            out_specs=pl.BlockSpec((TR, C), lambda i: (i, 0)),
        ),
        input_output_aliases={2: 0},   # x_flat buffer is donated to the output
        compiler_params=pltpu.CompilerParams(
            dimension_semantics=("parallel",),
            vmem_limit_bytes=48 * 1024 * 1024,
        ),
    )(scale_half, seed_arr, x_flat)

    rx = out_flat.reshape(N, P, S, 2)[:, :, : H * M, :]  # full slice, kept for fidelity
    return rx


if __name__ == "__main__":
    # Small shapes consistent with the module: N=2, P=2, M=16, H=8, complex dim=2.
    N, P, M, H = 2, 2, 16, 8
    SNR = 10.0
    SEED = 1234

    key = jax.random.PRNGKey(0)
    x = jax.random.normal(key, (N, P, M, H, 2), dtype=jnp.float32)

    rx = jax.block_until_ready(plain_forward(x, SNR, SEED))
    assert rx.shape == (N, P, M * H, 2), rx.shape

    # Determinism: same seed / SNR -> identical output.
    rx_again = jax.block_until_ready(plain_forward(x, SNR, SEED))
    assert jnp.array_equal(rx, rx_again), "kernel is not deterministic for a fixed seed"

    # Exact scaling check: +20 dB SNR with the same seed scales the added noise by 1/10.
    rx_hi = jax.block_until_ready(plain_forward(x, SNR + 20.0, SEED))
    xr = x.reshape(N, P, M * H, 2)
    n_lo = rx - xr
    n_hi = rx_hi - xr
    assert jnp.allclose(n_hi * 10.0, n_lo, atol=1e-4, rtol=1e-3), "SNR scaling mismatch"

    # Statistical check: (rx - x) / sqrt(noise_pwr / 2) should be ~N(0, 1), with
    # noise_pwr computed exactly as in the PyTorch reference formula.
    pwr = jnp.mean(xr ** 2, axis=(-2, -1), keepdims=True) * 2.0
    noise_pwr = pwr * 10.0 ** (-SNR / 10.0)
    z = n_lo / jnp.sqrt(noise_pwr / 2.0)
    assert abs(float(jnp.mean(z))) < 0.2, f"noise mean off: {float(jnp.mean(z))}"
    assert abs(float(jnp.std(z)) - 1.0) < 0.2, f"noise std off: {float(jnp.std(z))}"

    # TODO(synk): Channel / BatchConv1DLayer are constructed by PLAIN.__init__ but never
    # used in PLAIN.forward, so they are intentionally not implemented here.
    print("KERNEL_OK")
</pallas_src>

<mosaic_0001>
module attributes {stable_mosaic.version = 11 : i64} {
  func.func @_plain_kernel(%arg0: i32, %arg1: memref<1xf32, #tpu.memory_space<smem>>, %arg2: memref<1xi32, #tpu.memory_space<smem>>, %arg3: memref<4x256xf32, #tpu.memory_space<vmem>>, %arg4: memref<4x256xf32, #tpu.memory_space<vmem>>) attributes {dimension_semantics = [#tpu.dimension_semantics<parallel>], iteration_bounds = array<i64: 1>, scalar_prefetch = 0 : i64, scratch_operands = 0 : i64, tpu.core_type = #tpu.core_type<tc>, window_params = [{transform_indices = @transform_0, window_bounds = array<i64: 1>}, {transform_indices = @transform_1, window_bounds = array<i64: 1>}, {transform_indices = @transform_2, window_bounds = array<i64: 4, 256>}, {transform_indices = @transform_3, window_bounds = array<i64: 4, 256>}]} {
    %c0 = arith.constant 0 : index
    %c0_0 = arith.constant 0 : index
    %0 = vector.load %arg3[%c0, %c0_0] : memref<4x256xf32, #tpu.memory_space<vmem>>, vector<4x256xf32>
    %1 = arith.mulf %0, %0 : vector<4x256xf32>
    %cst = arith.constant dense<0.000000e+00> : vector<4xf32>
    %2 = vector.multi_reduction <add>, %1, %cst [1] : vector<4x256xf32> to vector<4xf32>
    %3 = vector.shape_cast %2 : vector<4xf32> to vector<4x1xf32>
    %cst_1 = arith.constant 7.812500e-03 : f32
    %4 = vector.broadcast %cst_1 : f32 to vector<4x1xf32>
    %5 = arith.mulf %3, %4 : vector<4x1xf32>
    %c0_2 = arith.constant 0 : index
    %6 = memref.load %arg1[%c0_2] : memref<1xf32, #tpu.memory_space<smem>>
    %7 = vector.broadcast %6 : f32 to vector<4x1xf32>
    %8 = arith.mulf %5, %7 : vector<4x1xf32>
    %9 = math.sqrt %8 : vector<4x1xf32>
    %c4_i32 = arith.constant 4 : i32
    %10 = arith.muli %arg0, %c4_i32 : i32
    %11 = tpu.iota {dimensions = array<i32: 0>} : vector<4x128xi32>
    %12 = vector.broadcast %10 : i32 to vector<4x128xi32>
    %13 = arith.addi %11, %12 : vector<4x128xi32>
    %14 = tpu.iota {dimensions = array<i32: 1>} : vector<4x128xi32>
    %c128_i32 = arith.constant 128 : i32
    %15 = vector.broadcast %c128_i32 : i32 to vector<4x128xi32>
    %16 = arith.muli %13, %15 : vector<4x128xi32>
    %17 = arith.addi %16, %14 : vector<4x128xi32>
    %c0_3 = arith.constant 0 : index
    %18 = memref.load %arg2[%c0_3] : memref<1xi32, #tpu.memory_space<smem>>
    %c-1640531535_i32 = arith.constant -1640531535 : i32
    %19 = arith.muli %18, %c-1640531535_i32 : i32
    %c1_i32 = arith.constant 1 : i32
    %20 = arith.addi %19, %c1_i32 : i32
    %c16_i32 = arith.constant 16 : i32
    %21 = arith.shrui %20, %c16_i32 : i32
    %22 = arith.xori %20, %21 : i32
    %c2146121005_i32 = arith.constant 2146121005 : i32
    %23 = arith.muli %22, %c2146121005_i32 : i32
    %c15_i32 = arith.constant 15 : i32
    %24 = arith.shrui %23, %c15_i32 : i32
    %25 = arith.xori %23, %24 : i32
    %c-2073418101_i32 = arith.constant -2073418101 : i32
    %26 = arith.muli %25, %c-2073418101_i32 : i32
    %c16_i32_4 = arith.constant 16 : i32
    %27 = arith.shrui %26, %c16_i32_4 : i32
    %28 = arith.xori %26, %27 : i32
    %c-1640531535_i32_5 = arith.constant -1640531535 : i32
    %29 = arith.muli %18, %c-1640531535_i32_5 : i32
    %c842468008_i32 = arith.constant 842468008 : i32
    %30 = arith.addi %29, %c842468008_i32 : i32
    %c16_i32_6 = arith.constant 16 : i32
    %31 = arith.shrui %30, %c16_i32_6 : i32
    %32 = arith.xori %30, %31 : i32
    %c2146121005_i32_7 = arith.constant 2146121005 : i32
    %33 = arith.muli %32, %c2146121005_i32_7 : i32
    %c15_i32_8 = arith.constant 15 : i32
    %34 = arith.shrui %33, %c15_i32_8 : i32
    %35 = arith.xori %33, %34 : i32
    %c-2073418101_i32_9 = arith.constant -2073418101 : i32
    %36 = arith.muli %35, %c-2073418101_i32_9 : i32
    %c16_i32_10 = arith.constant 16 : i32
    %37 = arith.shrui %36, %c16_i32_10 : i32
    %38 = arith.xori %36, %37 : i32
    %39 = vector.broadcast %28 : i32 to vector<4x128xi32>
    %40 = arith.xori %17, %39 : vector<4x128xi32>
    %c16_i32_11 = arith.constant 16 : i32
    %41 = vector.broadcast %c16_i32_11 : i32 to vector<4x128xi32>
    %42 = arith.shrui %40, %41 : vector<4x128xi32>
    %43 = arith.xori %40, %42 : vector<4x128xi32>
    %c2146121005_i32_12 = arith.constant 2146121005 : i32
    %44 = vector.broadcast %c2146121005_i32_12 : i32 to vector<4x128xi32>
    %45 = arith.muli %43, %44 : vector<4x128xi32>
    %c15_i32_13 = arith.constant 15 : i32
    %46 = vector.broadcast %c15_i32_13 : i32 to vector<4x128xi32>
    %47 = arith.shrui %45, %46 : vector<4x128xi32>
    %48 = arith.xori %45, %47 : vector<4x128xi32>
    %c-2073418101_i32_14 = arith.constant -2073418101 : i32
    %49 = vector.broadcast %c-2073418101_i32_14 : i32 to vector<4x128xi32>
    %50 = arith.muli %48, %49 : vector<4x128xi32>
    %c16_i32_15 = arith.constant 16 : i32
    %51 = vector.broadcast %c16_i32_15 : i32 to vector<4x128xi32>
    %52 = arith.shrui %50, %51 : vector<4x128xi32>
    %53 = arith.xori %50, %52 : vector<4x128xi32>
    %c8_i32 = arith.constant 8 : i32
    %54 = vector.broadcast %c8_i32 : i32 to vector<4x128xi32>
    %55 = arith.shrui %53, %54 : vector<4x128xi32>
    %56 = arith.sitofp %55 : vector<4x128xi32> to vector<4x128xf32>
    %cst_16 = arith.constant 1.000000e+00 : f32
    %57 = vector.broadcast %cst_16 : f32 to vector<4x128xf32>
    %58 = arith.addf %56, %57 : vector<4x128xf32>
    %cst_17 = arith.constant 5.96046448E-8 : f32
    %59 = vector.broadcast %cst_17 : f32 to vector<4x128xf32>
    %60 = arith.mulf %58, %59 : vector<4x128xf32>
    %61 = vector.broadcast %38 : i32 to vector<4x128xi32>
    %62 = arith.xori %17, %61 : vector<4x128xi32>
    %c16_i32_18 = arith.constant 16 : i32
    %63 = vector.broadcast %c16_i32_18 : i32 to vector<4x128xi32>
    %64 = arith.shrui %62, %63 : vector<4x128xi32>
    %65 = arith.xori %62, %64 : vector<4x128xi32>
    %c2146121005_i32_19 = arith.constant 2146121005 : i32
    %66 = vector.broadcast %c2146121005_i32_19 : i32 to vector<4x128xi32>
    %67 = arith.muli %65, %66 : vector<4x128xi32>
    %c15_i32_20 = arith.constant 15 : i32
    %68 = vector.broadcast %c15_i32_20 : i32 to vector<4x128xi32>
    %69 = arith.shrui %67, %68 : vector<4x128xi32>
    %70 = arith.xori %67, %69 : vector<4x128xi32>
    %c-2073418101_i32_21 = arith.constant -2073418101 : i32
    %71 = vector.broadcast %c-2073418101_i32_21 : i32 to vector<4x128xi32>
    %72 = arith.muli %70, %71 : vector<4x128xi32>
    %c16_i32_22 = arith.constant 16 : i32
    %73 = vector.broadcast %c16_i32_22 : i32 to vector<4x128xi32>
    %74 = arith.shrui %72, %73 : vector<4x128xi32>
    %75 = arith.xori %72, %74 : vector<4x128xi32>
    %c8_i32_23 = arith.constant 8 : i32
    %76 = vector.broadcast %c8_i32_23 : i32 to vector<4x128xi32>
    %77 = arith.shrui %75, %76 : vector<4x128xi32>
    %78 = arith.sitofp %77 : vector<4x128xi32> to vector<4x128xf32>
    %cst_24 = arith.constant 5.96046448E-8 : f32
    %79 = vector.broadcast %cst_24 : f32 to vector<4x128xf32>
    %80 = arith.mulf %78, %79 : vector<4x128xf32>
    %81 = math.log %60 : vector<4x128xf32>
    %cst_25 = arith.constant -2.000000e+00 : f32
    %82 = vector.broadcast %cst_25 : f32 to vector<4x128xf32>
    %83 = arith.mulf %82, %81 : vector<4x128xf32>
    %84 = math.sqrt %83 : vector<4x128xf32>
    %cst_26 = arith.constant 6.28318548 : f32
    %85 = vector.broadcast %cst_26 : f32 to vector<4x128xf32>
    %86 = arith.mulf %85, %80 : vector<4x128xf32>
    %87 = math.cos %86 : vector<4x128xf32>
    %88 = arith.mulf %84, %87 : vector<4x128xf32>
    %89 = math.sin %86 : vector<4x128xf32>
    %90 = arith.mulf %84, %89 : vector<4x128xf32>
    %91 = tpu.concatenate %88, %90 in 1 : vector<4x128xf32>, vector<4x128xf32> -> vector<4x256xf32>
    %92 = vector.broadcast %9 : vector<4x1xf32> to vector<4x256xf32>
    %93 = arith.mulf %92, %91 : vector<4x256xf32>
    %94 = arith.addf %0, %93 : vector<4x256xf32>
    %c0_27 = arith.constant 0 : index
    %c0_28 = arith.constant 0 : index
    %95 = vector.load %arg4[%c0_27, %c0_28] : memref<4x256xf32, #tpu.memory_space<vmem>>, vector<4x256xf32>
    tpu.vector_store %arg4[%c0_27, %c0_28], %94 {strides = array<i32>} : memref<4x256xf32, #tpu.memory_space<vmem>>, vector<4x256xf32>,
    return
  }
  func.func @transform_0(%arg0: i32) -> i32 {
    %c0_i32 = arith.constant 0 : i32
    %c0_i32_0 = arith.constant 0 : i32
    return %c0_i32 : i32
  }
  func.func @transform_1(%arg0: i32) -> i32 {
    %c0_i32 = arith.constant 0 : i32
    %c0_i32_0 = arith.constant 0 : i32
    return %c0_i32 : i32
  }
  func.func @transform_2(%arg0: i32) -> (i32, i32) {
    %c0_i32 = arith.constant 0 : i32
    %c0_i32_0 = arith.constant 0 : i32
    return %arg0, %c0_i32 : i32, i32
  }
  func.func @transform_3(%arg0: i32) -> (i32, i32) {
    %c0_i32 = arith.constant 0 : i32
    %c0_i32_0 = arith.constant 0 : i32
    return %arg0, %c0_i32 : i32, i32
  }
}

</mosaic_0001>

<llo_original>
// kernel: plain_forward.1
$region0: #{plain_forward.1}
  #allocation0 [shape = 'u32[]', space=smem, size = 0x4, offset = 0x4, fixed_abs, tag = 'smem constant byte address 0x4 - core index']
  #allocation1 [shape = 'u32[144,128]{1,0:T(1,128)}', space=vmem, size = 0x12000, scoped, tag = 'internal scratch']
  #allocation2 [shape = 'f32[1]{0:T(128)S(6)}', space=smem, size = 0x200, scoped, tag = 'scoped memory for plain_forward.1']
  #allocation3 [shape = 's32[1]{0:T(128)S(6)}', space=smem, size = 0x200, scoped, tag = 'scoped memory for plain_forward.1']
  %s0 = inlined_call_operand.<no memory space> [shape: f32[1], index: 0, kind: input, shape index: {}]
  %s1 = inlined_call_operand.<no memory space> [shape: s32[1], index: 1, kind: input, shape index: {}]
  %s2 = inlined_call_operand.vmem [shape: f32[4,256], index: 2, kind: input, shape index: {}, may-alias: {2,3}]
  %s3 = inlined_call_operand.vmem [shape: f32[4,256], index: 3, kind: output, shape index: {}, may-alias: {2,3}]
  %s4 = sld [smem:[#allocation0]]
  $region22: #{plain_forward.1} parent=0
    _
  %s6 = ssub.s32 1, %s4
  %s7 = scalar_select 0, %s6, %s4
  %8 = sst [smem:[#allocation2]] %s0
  %9 = sst [smem:[#allocation3]] %s1
  // Predicated region
  $region2: #{plain_forward.1} parent=0 // pred_check
    _
  $region3: #{plain_forward.1} parent=0 // pred_check_branch
    %11 = sbr.rel (0) target = $region5
  $region4: #{plain_forward.1} parent=0 // pred_region
    _
  $region5: #{plain_forward.1} parent=0 // pred_fallthru
    _
  // Predicated region
  $region6: #{plain_forward.1} parent=0 // pred_check
    _
  $region7: #{plain_forward.1} parent=0 // pred_check_branch
    %13 = sbr.rel (0) target = $region9
  $region8: #{plain_forward.1} parent=0 // pred_region
    _
  $region9: #{plain_forward.1} parent=0 // pred_fallthru
    _
  // Predicated region
  $region10: #{plain_forward.1} parent=0 // pred_check
    _
  $region11: #{plain_forward.1} parent=0 // pred_check_branch
    %15 = sbr.rel (0) target = $region13
  $region12: #{plain_forward.1} parent=0 // pred_region
    _
  $region13: #{plain_forward.1} parent=0 // pred_fallthru
    _
  %v16 = vld [vmem:[%s2] sm:$0xff]
  %v17 = vmul.f32 %v16, %v16
  %v19 = vcombine.high %v17, %v17
  %vm21 = vcmask 1043456
  %v22 = vsel %vm21, %v17, 0.0
  %v23 = vsel %vm21, %v19, 0.0
  %v24 = vadd.f32 %v22, %v23
  %25 = vadd.xlane.f32.xlu0 %v24
  %v26 = vpop.xlane.xlu0 %25
  %v27 = vmul.f32 %v26, 0.0078125
  %s28 = sld [smem:[#allocation2]]
  %v29 = vstv %s28
  %v30 = vmul.f32 %v27, %v29
  %v31 = vrsqrt.pop %v30
  %v32 = vmul.f32 %v30, %v31
  %vm33 = vcmp.eq.f32.partialorder %v30, inf
  %v34 = vsel %vm33, %v30, %v32
  %vm35 = vcmp.eq.f32.partialorder %v30, 0.0
  %v36 = vand.u32 %v30, 2147483648
  %v37 = vsel %vm35, %v36, %v34
  %s38 = smul.u32 0, 4
  %v39 = vlaneseq
  %v40 = vshrl.u32 %v39, 7
  %v41 = vstv %s38
  %v42 = vadd.s32 %v40, %v41
  %v43 = vlaneseq
  %v44 = vand.u32 %v43, 127
  %v45 = vmul.u32 %v42, 128
  %v46 = vadd.s32 %v45, %v44
  %s47 = sld [smem:[#allocation3]]
  %s48 = smul.u32 %s47, 2654435761
  %s49 = sadd.s32 %s48, 1
  %s50 = sshrl.u32 %s49, 16
  %s51 = sxor.u32 %s49, %s50
  %s52 = smul.u32 %s51, 2146121005
  %s53 = sshrl.u32 %s52, 15
  %s54 = sxor.u32 %s52, %s53
  %s55 = smul.u32 %s54, 2221549195
  %s56 = sshrl.u32 %s55, 16
  %s57 = sxor.u32 %s55, %s56
  %s58 = sadd.s32 %s48, 842468008
  %s59 = sshrl.u32 %s58, 16
  %s60 = sxor.u32 %s58, %s59
  %s61 = smul.u32 %s60, 2146121005
  %s62 = sshrl.u32 %s61, 15
  %s63 = sxor.u32 %s61, %s62
  %s64 = smul.u32 %s63, 2221549195
  %s65 = sshrl.u32 %s64, 16
  %s66 = sxor.u32 %s64, %s65
  %v67 = vstv %s57
  %v68 = vxor.u32 %v46, %v67
  %v69 = vshrl.u32 %v68, 16
  %v70 = vxor.u32 %v68, %v69
  %v71 = vmul.u32 %v70, 2146121005
  %v72 = vshrl.u32 %v71, 15
  %v73 = vxor.u32 %v71, %v72
  %v74 = vmul.u32 %v73, 2221549195
  %v75 = vshrl.u32 %v74, 16
  %v76 = vxor.u32 %v74, %v75
  %v77 = vshrl.u32 %v76, 8
  %v78 = vcvt.s32.f32 %v77
  %v79 = vadd.f32 %v78, 1.0
  %v80 = vmul.f32 %v79, 5.9604645e-08
  %v81 = vstv %s66
  %v82 = vxor.u32 %v46, %v81
  %v83 = vshrl.u32 %v82, 16
  %v84 = vxor.u32 %v82, %v83
  %v85 = vmul.u32 %v84, 2146121005
  %v86 = vshrl.u32 %v85, 15
  %v87 = vxor.u32 %v85, %v86
  %v88 = vmul.u32 %v87, 2221549195
  %v89 = vshrl.u32 %v88, 16
  %v90 = vxor.u32 %v88, %v89
  %v91 = vshrl.u32 %v90, 8
  %v92 = vcvt.s32.f32 %v91
  %v93 = vmul.f32 %v92, 5.9604645e-08
  %v94 = vlog2.pop %v80
  %v95 = vmul.f32 %v94, 0.6931472
  %v96 = vmul.f32 %v95, -2.0
  %v97 = vrsqrt.pop %v96
  %v98 = vmul.f32 %v96, %v97
  %vm99 = vcmp.eq.f32.partialorder %v96, inf
  %v100 = vsel %vm99, %v96, %v98
  %vm101 = vcmp.eq.f32.partialorder %v96, 0.0
  %v102 = vand.u32 %v96, 2147483648
  %v103 = vsel %vm101, %v102, %v100
  %v104 = vmul.f32 %v93, 6.2831855
  %v105 = vand.u32 2147483647, %v104
  %vm106 = vcmp.le.f32.partialorder %v105, 0.7853982
  %vm107 = vcmp.lt.s32.totalorder %v104, 0
  %v108 = vand.u32 %v104, 2139095040
  %v109 = vshrl.u32 %v108, 23
  %v110 = vsub.s32 %v109, 127
  %v111 = vand.u32 2147483647, %v104
  %v112 = vand.u32 %v111, 8388607
  %v113 = vor.u32 %v112, 8388608
  %v114 = vsub.s32 0, %v113
  %v115 = vadd.s32 %v110, 1
  %vm116 = vcmp.gt.s32.totalorder %v115, 0
  %v117 = vsel %vm116, %v115, 0
  %v118 = vshrl.u32 %v117, 5
  %v119 = vand.u32 %v117, 31
  %v120 = vsub.s32 32, %v119
  %v121 = vshrl.u32 683565275, %v120
  %v122 = vshll.u32 683565275, %v119
  %v123 = vshrl.u32 2475754826, %v120
  %v124 = vor.u32 %v122, %v123
  %v125 = vshll.u32 2475754826, %v119
  %v126 = vshrl.u32 2131351028, %v120
  %v127 = vor.u32 %v125, %v126
  %v128 = vshll.u32 2131351028, %v119
  %v129 = vshrl.u32 2102212464, %v120
  %v130 = vor.u32 %v128, %v129
  %v131 = vshll.u32 2102212464, %v119
  %v132 = vshrl.u32 920167782, %v120
  %v133 = vor.u32 %v131, %v132
  %v134 = vshll.u32 920167782, %v119
  %v135 = vshrl.u32 1326507024, %v120
  %v136 = vor.u32 %v134, %v135
  %vm137 = vcmp.lt.s32.totalorder %v118, 1
  %vm138 = vcmp.lt.s32.totalorder %v118, 2
  %vm139 = vcmp.lt.s32.totalorder %v118, 3
  %vm140 = vcmp.lt.s32.totalorder %v118, 4
  %v141 = vsel %vm137, %v121, %v124
  %v142 = vsel %vm140, %v130, 2102212464
  %v143 = vsel %vm139, %v127, %v142
  %v144 = vsel %vm138, %v141, %v143
  %v145 = vsel %vm137, %v124, %v127
  %v146 = vsel %vm140, %v133, 920167782
  %v147 = vsel %vm139, %v130, %v146
  %v148 = vsel %vm138, %v145, %v147
  %v149 = vsel %vm137, %v127, %v130
  %v150 = vsel %vm140, %v136, 1326507024
  %v151 = vsel %vm139, %v133, %v150
  %v152 = vsel %vm138, %v149, %v151
  %v153 = vshll.u32 %v113, 8
  %v154 = vmul.u32.u64.compose %v153, %v152
  %v155 = vextract.low.u32 %v154
  %v156 = vextract.high.u32 %v154
  %v157 = vmul.u32.u64.compose %v153, %v148
  %v158 = vextract.low.u32 %v157
  %v159 = vextract.high.u32 %v157
  %v160 = vmul.u32 %v153, %v144
  %v161 = vadd.s32 %v156, %v158
  %vm162 = vc.u32 %v156, %v158
  %v163 = vadd.s32 %v159, 1
  %v164 = vsel %vm162, %v163, %v159
  %v165 = vadd.s32 %v160, %v164
  %v166 = vadd.s32 %v165, 536870912
  %v167 = vshrl.u32 %v166, 30
  %v168 = vshll.u32 %v167, 30
  %v169 = vsub.s32 %v165, %v168
  %vm170 = vcmp.lt.s32.totalorder %v169, 0
  %v171 = vsub.s32 0, %v169
  %v172 = vsel %vm170, %v171, %v169
  %v173 = vclz %v172
  %v174 = vsub.s32 %v173, 2
  %vm175 = vcmp.gt.s32.totalorder 0, %v174
  %v176 = vsel %vm175, 0, %v174
  %v177 = vsub.s32 32, %v176
  %v178 = vshll.u32 %v169, %v176
  %v179 = vshrl.u32 %v161, %v177
  %v180 = vor.u32 %v178, %v179
  %v181 = vsub.s32 4294967266, %v176
  %v182 = vadd.s32 %v181, 127
  %v183 = vshll.u32 %v182, 23
  %v184 = vor.u32 4788187, %v183
  %v185 = vand.u32 2147483647, %v184
  %v187 = vcvt.s32.f32 %v180
  %v188 = vmul.f32 %v187, %v185
  %v189 = vxor.u32 %v188, 2147483648
  %v190 = vsel %vm107, %v189, %v188
  %v191 = vsub.s32 4, %v167
  %v192 = vsel %vm107, %v191, %v167
  %v193 = vsel %vm106, %v104, %v190
  %v194 = vsel %vm106, 0, %v192
  %v195 = vcosq.f32.pop %v193
  %v196 = vsinq.f32.pop %v193
  %vm197 = vweird.f32 %v104
  %v198 = vand.u32 %v194, 3
  %vm199 = vcmp.lt.s32.totalorder %v198, 2
  %vm200 = vcmp.eq.s32.totalorder %v198, 0
  %v201 = vxor.u32 %v196, 2147483648
  %v202 = vsel %vm200, %v195, %v201
  %vm203 = vcmp.eq.s32.totalorder %v198, 2
  %v204 = vxor.u32 %v195, 2147483648
  %v205 = vsel %vm203, %v204, %v196
  %v206 = vsel %vm199, %v202, %v205
  %v207 = vsel %vm197, nan, %v206
  %v208 = vmul.f32 %v103, %v207
  %v209 = vand.u32 2147483647, %v104
  %vm210 = vcmp.le.f32.partialorder %v209, 0.7853982
  %vm211 = vcmp.lt.s32.totalorder %v104, 0
  %v212 = vand.u32 %v104, 2139095040
  %v213 = vshrl.u32 %v212, 23
  %v214 = vsub.s32 %v213, 127
  %v215 = vand.u32 2147483647, %v104
  %v216 = vand.u32 %v215, 8388607
  %v217 = vor.u32 %v216, 8388608
  %v218 = vsub.s32 0, %v217
  %v219 = vadd.s32 %v214, 1
  %vm220 = vcmp.gt.s32.totalorder %v219, 0
  %v221 = vsel %vm220, %v219, 0
  %v222 = vshrl.u32 %v221, 5
  %v223 = vand.u32 %v221, 31
  %v224 = vsub.s32 32, %v223
  %v225 = vshrl.u32 683565275, %v224
  %v226 = vshll.u32 683565275, %v223
  %v227 = vshrl.u32 2475754826, %v224
  %v228 = vor.u32 %v226, %v227
  %v229 = vshll.u32 2475754826, %v223
  %v230 = vshrl.u32 2131351028, %v224
  %v231 = vor.u32 %v229, %v230
  %v232 = vshll.u32 2131351028, %v223
  %v233 = vshrl.u32 2102212464, %v224
  %v234 = vor.u32 %v232, %v233
  %v235 = vshll.u32 2102212464, %v223
  %v236 = vshrl.u32 920167782, %v224
  %v237 = vor.u32 %v235, %v236
  %v238 = vshll.u32 920167782, %v223
  %v239 = vshrl.u32 1326507024, %v224
  %v240 = vor.u32 %v238, %v239
  %vm241 = vcmp.lt.s32.totalorder %v222, 1
  %vm242 = vcmp.lt.s32.totalorder %v222, 2
  %vm243 = vcmp.lt.s32.totalorder %v222, 3
  %vm244 = vcmp.lt.s32.totalorder %v222, 4
  %v245 = vsel %vm241, %v225, %v228
  %v246 = vsel %vm244, %v234, 2102212464
  %v247 = vsel %vm243, %v231, %v246
  %v248 = vsel %vm242, %v245, %v247
  %v249 = vsel %vm241, %v228, %v231
  %v250 = vsel %vm244, %v237, 920167782
  %v251 = vsel %vm243, %v234, %v250
  %v252 = vsel %vm242, %v249, %v251
  %v253 = vsel %vm241, %v231, %v234
  %v254 = vsel %vm244, %v240, 1326507024
  %v255 = vsel %vm243, %v237, %v254
  %v256 = vsel %vm242, %v253, %v255
  %v257 = vshll.u32 %v217, 8
  %v258 = vmul.u32.u64.compose %v257, %v256
  %v259 = vextract.low.u32 %v258
  %v260 = vextract.high.u32 %v258
  %v261 = vmul.u32.u64.compose %v257, %v252
  %v262 = vextract.low.u32 %v261
  %v263 = vextract.high.u32 %v261
  %v264 = vmul.u32 %v257, %v248
  %v265 = vadd.s32 %v260, %v262
  %vm266 = vc.u32 %v260, %v262
  %v267 = vadd.s32 %v263, 1
  %v268 = vsel %vm266, %v267, %v263
  %v269 = vadd.s32 %v264, %v268
  %v270 = vadd.s32 %v269, 536870912
  %v271 = vshrl.u32 %v270, 30
  %v272 = vshll.u32 %v271, 30
  %v273 = vsub.s32 %v269, %v272
  %vm274 = vcmp.lt.s32.totalorder %v273, 0
  %v275 = vsub.s32 0, %v273
  %v276 = vsel %vm274, %v275, %v273
  %v277 = vclz %v276
  %v278 = vsub.s32 %v277, 2
  %vm279 = vcmp.gt.s32.totalorder 0, %v278
  %v280 = vsel %vm279, 0, %v278
  %v281 = vsub.s32 32, %v280
  %v282 = vshll.u32 %v273, %v280
  %v283 = vshrl.u32 %v265, %v281
  %v284 = vor.u32 %v282, %v283
  %v285 = vsub.s32 4294967266, %v280
  %v286 = vadd.s32 %v285, 127
  %v287 = vshll.u32 %v286, 23
  %v288 = vor.u32 4788187, %v287
  %v289 = vand.u32 2147483647, %v288
  %v291 = vcvt.s32.f32 %v284
  %v292 = vmul.f32 %v291, %v289
  %v293 = vxor.u32 %v292, 2147483648
  %v294 = vsel %vm211, %v293, %v292
  %v295 = vsub.s32 4, %v271
  %v296 = vsel %vm211, %v295, %v271
  %v297 = vsel %vm210, %v104, %v294
  %v298 = vsel %vm210, 0, %v296
  %v299 = vcosq.f32.pop %v297
  %v300 = vsinq.f32.pop %v297
  %vm301 = vweird.f32 %v104
  %v302 = vadd.s32 %v298, 3
  %v303 = vand.u32 %v302, 3
  %vm304 = vcmp.lt.s32.totalorder %v303, 2
  %vm305 = vcmp.eq.s32.totalorder %v303, 0
  %v306 = vxor.u32 %v300, 2147483648
  %v307 = vsel %vm305, %v299, %v306
  %vm308 = vcmp.eq.s32.totalorder %v303, 2
  %v309 = vxor.u32 %v299, 2147483648
  %v310 = vsel %vm308, %v309, %v300
  %v311 = vsel %vm304, %v307, %v310
  %v312 = vsel %vm301, nan, %v311
  %v313 = vmul.f32 %v103, %v312
  %v314 = vmul.f32 %v37, %v208
  %v315 = vmul.f32 %v37, %v313
  %v318 = vcombine.low %v314, %v315
  %v320 = vadd.f32 %v16, %v318
  %321 = vst [vmem:[%s3] sm:$0xff] %v320
  // Predicated region
  $region14: #{plain_forward.1} parent=0 // pred_check
    _
  $region15: #{plain_forward.1} parent=0 // pred_check_branch
    %323 = sbr.rel (0) target = $region17
  $region16: #{plain_forward.1} parent=0 // pred_region
    _
  $region17: #{plain_forward.1} parent=0 // pred_fallthru
    _
  // Predicated region
  $region18: #{plain_forward.1} parent=0 // pred_check
    _
  $region19: #{plain_forward.1} parent=0 // pred_check_branch
    %325 = sbr.rel (0) target = $region21
  $region20: #{plain_forward.1} parent=0 // pred_region
    _
  $region21: #{plain_forward.1} parent=0 // pred_fallthru
    _

</llo_original>
